<compile_context>
chip_gen: v7x
topology: tpu7x:2x2x1
jax: 0.10.0
libtpu: 0.0.40
codegen_flags: <defaults>
</compile_context>

<pallas_src>
import jax
import jax.numpy as jnp
from jax.experimental import pallas as pl
from jax.experimental.pallas import tpu as pltpu

# Offsets into the packed parameter vector (see _pack_params):
#   [ w1^T (2x3 row-major) | b1 (3) | w2^T (3x3 row-major) | b2 (3) | w3^T (3) | b3 (1) | pad ]
_IW1, _IB1 = 0, 6
_IW2, _IB2 = 9, 18
_IW3, _IB3 = 21, 24
_NPARAMS = 32  # padded length of the packed parameter vector

_LANES = 128
_ROW_ALIGN = 8 * _LANES  # 1024 rows: one (8,128) f32 vreg-tile of the lane-dense layout


def _mlp_kernel(p_ref, x_ref, o_ref):
    # p_ref: (32,) f32 in SMEM (constant across grid steps).
    # x_ref: (2, TR, 128) f32 in VMEM -- two lane-dense feature planes.
    # o_ref: (TR, 128) f32 in VMEM   -- lane-dense output slab.
    x0 = x_ref[0]  # (TR, 128), all lanes useful
    x1 = x_ref[1]

    # fc1 (2 -> 3) + ReLU: scalar-weight multiply-adds on the VPU.
    h1 = [
        jnp.maximum(
            x0 * p_ref[_IW1 + j] + x1 * p_ref[_IW1 + 3 + j] + p_ref[_IB1 + j], 0.0
        )
        for j in range(3)
    ]
    # fc2 (3 -> 3) + ReLU.
    h2 = [
        jnp.maximum(
            h1[0] * p_ref[_IW2 + j]
            + h1[1] * p_ref[_IW2 + 3 + j]
            + h1[2] * p_ref[_IW2 + 6 + j]
            + p_ref[_IB2 + j],
            0.0,
        )
        for j in range(3)
    ]
    # fc3 (3 -> 1), no activation.
    y = (
        h2[0] * p_ref[_IW3 + 0]
        + h2[1] * p_ref[_IW3 + 1]
        + h2[2] * p_ref[_IW3 + 2]
        + p_ref[_IB3]
    )
    o_ref[...] = y.astype(o_ref.dtype)


def _pack_params(params):
    """Pack PyTorch-layout (out,in) weights & biases into one flat f32 vector."""
    flat = jnp.concatenate(
        [
            params["w1"].T.reshape(-1),  # (2,3) row-major -> 6 scalars
            params["b1"].reshape(-1),    # 3
            params["w2"].T.reshape(-1),  # (3,3) row-major -> 9
            params["b2"].reshape(-1),    # 3
            params["w3"].T.reshape(-1),  # (3,1) -> 3
            params["b3"].reshape(-1),    # 1
        ]
    ).astype(jnp.float32)
    return jnp.pad(flat, (0, _NPARAMS - flat.shape[0]))


def simple_net_forward(x, params, tile_b=131072):
    """x: (B, 2) float32 -> (B, 1) float32 (matches SimpleNet.forward)."""
    B = x.shape[0]

    # tile_b must be a multiple of 1024 rows so the lane-dense blocks keep the
    # (8,128) alignment after folding the batch onto (sublane, lane).
    tile_b = max(_ROW_ALIGN, (tile_b // _ROW_ALIGN) * _ROW_ALIGN)
    if B <= tile_b:
        # Single-call sizing: aim for 2 grid steps so v7x can shard the batch
        # across both TensorCores; fall back to one minimal 1024-row tile.
        tile_b = max(_ROW_ALIGN, pl.cdiv(B, 2 * _ROW_ALIGN) * _ROW_ALIGN)

    B_pad = pl.cdiv(B, tile_b) * tile_b
    grid = (B_pad // tile_b,)
    rows = B_pad // _LANES          # total lane-dense rows
    tile_rows = tile_b // _LANES    # rows per grid step (multiple of 8)

    # Pad + transpose + reshape into lane-dense feature planes (2, rows, 128).
    # Batch index b lands at (b // 128, b % 128) in each plane, so the output
    # slab reshapes back to batch order for free.
    x_p = x.astype(jnp.float32)
    if B_pad != B:
        x_p = jnp.pad(x_p, ((0, B_pad - B), (0, 0)))
    x_planes = x_p.T.reshape(2, rows, _LANES)

    p_flat = _pack_params(params)

    out_slab = pl.pallas_call(
        _mlp_kernel,
        out_shape=jax.ShapeDtypeStruct((rows, _LANES), jnp.float32),
        grid=grid,
        in_specs=[
            pl.BlockSpec(memory_space=pltpu.MemorySpace.SMEM),        # packed params
            pl.BlockSpec((2, tile_rows, _LANES), lambda i: (0, i, 0)),  # x planes
        ],
        out_specs=pl.BlockSpec((tile_rows, _LANES), lambda i: (i, 0)),
        compiler_params=pltpu.CompilerParams(
            dimension_semantics=("parallel",),
        ),
        cost_estimate=pl.CostEstimate(
            flops=43 * B_pad,
            transcendentals=0,
            bytes_accessed=12 * B_pad + 4 * _NPARAMS,
        ),
    )(p_flat, x_planes)

    # (rows, 128) row-major == batch order; padded tail rows are garbage and sliced off.
    return out_slab.reshape(B_pad, 1)[:B, :]


def _init_params(key):
    """Deterministic init mimicking nn.Linear's uniform(-1/sqrt(fan_in), +)."""
    ks = jax.random.split(key, 6)

    def lin(kw, kb, fan_in, fan_out):
        bound = 1.0 / jnp.sqrt(fan_in)
        w = jax.random.uniform(kw, (fan_out, fan_in), jnp.float32, -bound, bound)
        b = jax.random.uniform(kb, (fan_out,), jnp.float32, -bound, bound)
        return w, b

    w1, b1 = lin(ks[0], ks[1], 2, 3)
    w2, b2 = lin(ks[2], ks[3], 3, 3)
    w3, b3 = lin(ks[4], ks[5], 3, 1)
    return {"w1": w1, "b1": b1, "w2": w2, "b2": b2, "w3": w3, "b3": b3}


def _ref_forward(x, p):
    h1 = jnp.maximum(x @ p["w1"].T + p["b1"], 0.0)
    h2 = jnp.maximum(h1 @ p["w2"].T + p["b2"], 0.0)
    return h2 @ p["w3"].T + p["b3"]


if __name__ == "__main__":
    key = jax.random.PRNGKey(0)
    kx, kp, kx2 = jax.random.split(key, 3)
    params = _init_params(kp)

    # Small single-tile check (B=8): pads to one 1024-row lane-dense tile.
    x = jax.random.normal(kx, (8, 2), jnp.float32)
    out = jax.block_until_ready(simple_net_forward(x, params))
    ref = _ref_forward(x, params)
    assert out.shape == (8, 1), out.shape
    assert jnp.allclose(out, ref, atol=1e-5, rtol=1e-5), (out, ref)

    # Multi-step grid + batch-padding check (exercises pipelining and the
    # "parallel" batch axis): B=2000 with tile_b=1024 -> grid=(2,).
    x2 = jax.random.normal(kx2, (2000, 2), jnp.float32)
    out2 = jax.block_until_ready(simple_net_forward(x2, params, tile_b=1024))
    ref2 = _ref_forward(x2, params)
    assert out2.shape == (2000, 1), out2.shape
    assert jnp.allclose(out2, ref2, atol=1e-5, rtol=1e-5)

    print("KERNEL_OK")
</pallas_src>

<mosaic_0001>
module attributes {stable_mosaic.version = 11 : i64} {
  func.func @_mlp_kernel(%arg0: i32, %arg1: memref<32xf32, #tpu.memory_space<smem>>, %arg2: memref<2x8x128xf32, #tpu.memory_space<vmem>>, %arg3: memref<8x128xf32, #tpu.memory_space<vmem>>) attributes {dimension_semantics = [#tpu.dimension_semantics<parallel>], iteration_bounds = array<i64: 1>, scalar_prefetch = 0 : i64, scratch_operands = 0 : i64, tpu.core_type = #tpu.core_type<tc>, window_params = [{transform_indices = @transform_0, window_bounds = array<i64: 32>}, {transform_indices = @transform_1, window_bounds = array<i64: 2, 8, 128>}, {transform_indices = @transform_2, window_bounds = array<i64: 8, 128>}]} {
    %c0 = arith.constant 0 : index
    %c0_0 = arith.constant 0 : index
    %c0_1 = arith.constant 0 : index
    %0 = vector.load %arg2[%c0, %c0_0, %c0_1] : memref<2x8x128xf32, #tpu.memory_space<vmem>>, vector<1x8x128xf32>
    %1 = vector.shape_cast %0 : vector<1x8x128xf32> to vector<8x128xf32>
    %c1 = arith.constant 1 : index
    %c0_2 = arith.constant 0 : index
    %c0_3 = arith.constant 0 : index
    %2 = vector.load %arg2[%c1, %c0_2, %c0_3] : memref<2x8x128xf32, #tpu.memory_space<vmem>>, vector<1x8x128xf32>
    %3 = vector.shape_cast %2 : vector<1x8x128xf32> to vector<8x128xf32>
    %c0_4 = arith.constant 0 : index
    %4 = memref.load %arg1[%c0_4] : memref<32xf32, #tpu.memory_space<smem>>
    %5 = vector.broadcast %4 : f32 to vector<8x128xf32>
    %6 = arith.mulf %1, %5 : vector<8x128xf32>
    %c3 = arith.constant 3 : index
    %7 = memref.load %arg1[%c3] : memref<32xf32, #tpu.memory_space<smem>>
    %8 = vector.broadcast %7 : f32 to vector<8x128xf32>
    %9 = arith.mulf %3, %8 : vector<8x128xf32>
    %10 = arith.addf %6, %9 : vector<8x128xf32>
    %c6 = arith.constant 6 : index
    %11 = memref.load %arg1[%c6] : memref<32xf32, #tpu.memory_space<smem>>
    %12 = vector.broadcast %11 : f32 to vector<8x128xf32>
    %13 = arith.addf %10, %12 : vector<8x128xf32>
    %cst = arith.constant 0.000000e+00 : f32
    %14 = vector.broadcast %cst : f32 to vector<8x128xf32>
    %15 = arith.maximumf %13, %14 : vector<8x128xf32>
    %c1_5 = arith.constant 1 : index
    %16 = memref.load %arg1[%c1_5] : memref<32xf32, #tpu.memory_space<smem>>
    %17 = vector.broadcast %16 : f32 to vector<8x128xf32>
    %18 = arith.mulf %1, %17 : vector<8x128xf32>
    %c4 = arith.constant 4 : index
    %19 = memref.load %arg1[%c4] : memref<32xf32, #tpu.memory_space<smem>>
    %20 = vector.broadcast %19 : f32 to vector<8x128xf32>
    %21 = arith.mulf %3, %20 : vector<8x128xf32>
    %22 = arith.addf %18, %21 : vector<8x128xf32>
    %c7 = arith.constant 7 : index
    %23 = memref.load %arg1[%c7] : memref<32xf32, #tpu.memory_space<smem>>
    %24 = vector.broadcast %23 : f32 to vector<8x128xf32>
    %25 = arith.addf %22, %24 : vector<8x128xf32>
    %cst_6 = arith.constant 0.000000e+00 : f32
    %26 = vector.broadcast %cst_6 : f32 to vector<8x128xf32>
    %27 = arith.maximumf %25, %26 : vector<8x128xf32>
    %c2 = arith.constant 2 : index
    %28 = memref.load %arg1[%c2] : memref<32xf32, #tpu.memory_space<smem>>
    %29 = vector.broadcast %28 : f32 to vector<8x128xf32>
    %30 = arith.mulf %1, %29 : vector<8x128xf32>
    %c5 = arith.constant 5 : index
    %31 = memref.load %arg1[%c5] : memref<32xf32, #tpu.memory_space<smem>>
    %32 = vector.broadcast %31 : f32 to vector<8x128xf32>
    %33 = arith.mulf %3, %32 : vector<8x128xf32>
    %34 = arith.addf %30, %33 : vector<8x128xf32>
    %c8 = arith.constant 8 : index
    %35 = memref.load %arg1[%c8] : memref<32xf32, #tpu.memory_space<smem>>
    %36 = vector.broadcast %35 : f32 to vector<8x128xf32>
    %37 = arith.addf %34, %36 : vector<8x128xf32>
    %cst_7 = arith.constant 0.000000e+00 : f32
    %38 = vector.broadcast %cst_7 : f32 to vector<8x128xf32>
    %39 = arith.maximumf %37, %38 : vector<8x128xf32>
    %c9 = arith.constant 9 : index
    %40 = memref.load %arg1[%c9] : memref<32xf32, #tpu.memory_space<smem>>
    %41 = vector.broadcast %40 : f32 to vector<8x128xf32>
    %42 = arith.mulf %15, %41 : vector<8x128xf32>
    %c12 = arith.constant 12 : index
    %43 = memref.load %arg1[%c12] : memref<32xf32, #tpu.memory_space<smem>>
    %44 = vector.broadcast %43 : f32 to vector<8x128xf32>
    %45 = arith.mulf %27, %44 : vector<8x128xf32>
    %46 = arith.addf %42, %45 : vector<8x128xf32>
    %c15 = arith.constant 15 : index
    %47 = memref.load %arg1[%c15] : memref<32xf32, #tpu.memory_space<smem>>
    %48 = vector.broadcast %47 : f32 to vector<8x128xf32>
    %49 = arith.mulf %39, %48 : vector<8x128xf32>
    %50 = arith.addf %46, %49 : vector<8x128xf32>
    %c18 = arith.constant 18 : index
    %51 = memref.load %arg1[%c18] : memref<32xf32, #tpu.memory_space<smem>>
    %52 = vector.broadcast %51 : f32 to vector<8x128xf32>
    %53 = arith.addf %50, %52 : vector<8x128xf32>
    %cst_8 = arith.constant 0.000000e+00 : f32
    %54 = vector.broadcast %cst_8 : f32 to vector<8x128xf32>
    %55 = arith.maximumf %53, %54 : vector<8x128xf32>
    %c10 = arith.constant 10 : index
    %56 = memref.load %arg1[%c10] : memref<32xf32, #tpu.memory_space<smem>>
    %57 = vector.broadcast %56 : f32 to vector<8x128xf32>
    %58 = arith.mulf %15, %57 : vector<8x128xf32>
    %c13 = arith.constant 13 : index
    %59 = memref.load %arg1[%c13] : memref<32xf32, #tpu.memory_space<smem>>
    %60 = vector.broadcast %59 : f32 to vector<8x128xf32>
    %61 = arith.mulf %27, %60 : vector<8x128xf32>
    %62 = arith.addf %58, %61 : vector<8x128xf32>
    %c16 = arith.constant 16 : index
    %63 = memref.load %arg1[%c16] : memref<32xf32, #tpu.memory_space<smem>>
    %64 = vector.broadcast %63 : f32 to vector<8x128xf32>
    %65 = arith.mulf %39, %64 : vector<8x128xf32>
    %66 = arith.addf %62, %65 : vector<8x128xf32>
    %c19 = arith.constant 19 : index
    %67 = memref.load %arg1[%c19] : memref<32xf32, #tpu.memory_space<smem>>
    %68 = vector.broadcast %67 : f32 to vector<8x128xf32>
    %69 = arith.addf %66, %68 : vector<8x128xf32>
    %cst_9 = arith.constant 0.000000e+00 : f32
    %70 = vector.broadcast %cst_9 : f32 to vector<8x128xf32>
    %71 = arith.maximumf %69, %70 : vector<8x128xf32>
    %c11 = arith.constant 11 : index
    %72 = memref.load %arg1[%c11] : memref<32xf32, #tpu.memory_space<smem>>
    %73 = vector.broadcast %72 : f32 to vector<8x128xf32>
    %74 = arith.mulf %15, %73 : vector<8x128xf32>
    %c14 = arith.constant 14 : index
    %75 = memref.load %arg1[%c14] : memref<32xf32, #tpu.memory_space<smem>>
    %76 = vector.broadcast %75 : f32 to vector<8x128xf32>
    %77 = arith.mulf %27, %76 : vector<8x128xf32>
    %78 = arith.addf %74, %77 : vector<8x128xf32>
    %c17 = arith.constant 17 : index
    %79 = memref.load %arg1[%c17] : memref<32xf32, #tpu.memory_space<smem>>
    %80 = vector.broadcast %79 : f32 to vector<8x128xf32>
    %81 = arith.mulf %39, %80 : vector<8x128xf32>
    %82 = arith.addf %78, %81 : vector<8x128xf32>
    %c20 = arith.constant 20 : index
    %83 = memref.load %arg1[%c20] : memref<32xf32, #tpu.memory_space<smem>>
    %84 = vector.broadcast %83 : f32 to vector<8x128xf32>
    %85 = arith.addf %82, %84 : vector<8x128xf32>
    %cst_10 = arith.constant 0.000000e+00 : f32
    %86 = vector.broadcast %cst_10 : f32 to vector<8x128xf32>
    %87 = arith.maximumf %85, %86 : vector<8x128xf32>
    %c21 = arith.constant 21 : index
    %88 = memref.load %arg1[%c21] : memref<32xf32, #tpu.memory_space<smem>>
    %89 = vector.broadcast %88 : f32 to vector<8x128xf32>
    %90 = arith.mulf %55, %89 : vector<8x128xf32>
    %c22 = arith.constant 22 : index
    %91 = memref.load %arg1[%c22] : memref<32xf32, #tpu.memory_space<smem>>
    %92 = vector.broadcast %91 : f32 to vector<8x128xf32>
    %93 = arith.mulf %71, %92 : vector<8x128xf32>
    %94 = arith.addf %90, %93 : vector<8x128xf32>
    %c23 = arith.constant 23 : index
    %95 = memref.load %arg1[%c23] : memref<32xf32, #tpu.memory_space<smem>>
    %96 = vector.broadcast %95 : f32 to vector<8x128xf32>
    %97 = arith.mulf %87, %96 : vector<8x128xf32>
    %98 = arith.addf %94, %97 : vector<8x128xf32>
    %c24 = arith.constant 24 : index
    %99 = memref.load %arg1[%c24] : memref<32xf32, #tpu.memory_space<smem>>
    %100 = vector.broadcast %99 : f32 to vector<8x128xf32>
    %101 = arith.addf %98, %100 : vector<8x128xf32>
    %c0_11 = arith.constant 0 : index
    %c0_12 = arith.constant 0 : index
    %102 = vector.load %arg3[%c0_11, %c0_12] : memref<8x128xf32, #tpu.memory_space<vmem>>, vector<8x128xf32>
    tpu.vector_store %arg3[%c0_11, %c0_12], %101 {strides = array<i32>} : memref<8x128xf32, #tpu.memory_space<vmem>>, vector<8x128xf32>,
    return
  }
  func.func @transform_0(%arg0: i32) -> i32 {
    %c0_i32 = arith.constant 0 : i32
    %c0_i32_0 = arith.constant 0 : i32
    return %c0_i32 : i32
  }
  func.func @transform_1(%arg0: i32) -> (i32, i32, i32) {
    %c0_i32 = arith.constant 0 : i32
    %c0_i32_0 = arith.constant 0 : i32
    %c0_i32_1 = arith.constant 0 : i32
    return %c0_i32, %arg0, %c0_i32_0 : i32, i32, i32
  }
  func.func @transform_2(%arg0: i32) -> (i32, i32) {
    %c0_i32 = arith.constant 0 : i32
    %c0_i32_0 = arith.constant 0 : i32
    return %arg0, %c0_i32 : i32, i32
  }
}

</mosaic_0001>

<llo_original>
// kernel: tpu_custom_call.1
$region0: #{tpu_custom_call.1}
  #allocation0 [shape = 'u32[]', space=smem, size = 0x4, offset = 0x4, fixed_abs, tag = 'smem constant byte address 0x4 - core index']
  #allocation1 [shape = 'u32[144,128]{1,0:T(1,128)}', space=vmem, size = 0x12000, scoped, tag = 'internal scratch']
  %s0 = inlined_call_operand.hbm [shape: f32[32], index: 0, kind: input, shape index: {}]
  %s1 = inlined_call_operand.hbm [shape: f32[2,8,128], index: 1, kind: input, shape index: {}]
  %s2 = inlined_call_operand.hbm [shape: f32[8,128], index: 2, kind: output, shape index: {}]
  %s3 = sld [smem:[#allocation0]]
  $region26: #{tpu_custom_call.1} parent=0
    _
  %s5 = ssub.s32 1, %s3
  %s6 = scalar_select 0, %s5, %s3
  $region1: #{tpu_custom_call.1} parent=0
    #allocation2 [shape = 'u8[512]{0}', space=smem, size = 0x200, scoped, tag = 'input window, operand 0, single buffered']
    #allocation3 [shape = 's32[1]{0}', space=sflag, size = 0x4, scoped, tag = 'scoped memory for tpu_custom_call.1']
    #allocation4 [shape = 's32[1]{0}', space=sflag, size = 0x4, scoped, tag = 'scoped memory for tpu_custom_call.1']
    #allocation5 [shape = 's32[1]{0}', space=sflag, size = 0x4, scoped, tag = 'scoped memory for tpu_custom_call.1']
    #allocation6 [shape = 'u8[8192]{0}', space=vmem, size = 0x2000, scoped, tag = 'input window, operand 1, single buffered']
    #allocation7 [shape = 'u8[4096]{0}', space=vmem, size = 0x1000, scoped, tag = 'output window, operand 0, single buffered']
    %7 = vsyncpa [#allocation5], 0
    %8 = vsyncpa [#allocation3], 0
    %9 = vsyncpa [#allocation4], 0
    // Predicated region
    $region2: #{tpu_custom_call.1} parent=1 // pred_check
      _
    $region3: #{tpu_custom_call.1} parent=1 // pred_check_branch
      %11 = sbr.rel (0) target = $region5
    $region4: #{tpu_custom_call.1} parent=1 // pred_region
      %s13 = ssub.s32 16, 16
      %14 = vsyncadd [#allocation5], %s13
      %17 = dma.hbm_to_smem %s0, 16, [#allocation2], [#allocation5]
    $region5: #{tpu_custom_call.1} parent=1 // pred_fallthru
      _
    // Predicated region
    $region6: #{tpu_custom_call.1} parent=1 // pred_check
      _
    $region7: #{tpu_custom_call.1} parent=1 // pred_check_branch
      %19 = sbr.rel (0) target = $region9
    $region8: #{tpu_custom_call.1} parent=1 // pred_region
      %s21 = ssub.s32 256, 256
      %22 = vsyncadd [#allocation3], %s21
      %s23 = sshll.u32 [#allocation6], 4
      %s24 = int_to_ptr.vmem [resolvable:$true] %s23
      %29 = dma.hbm_to_vmem [thread:$0]  %s1, 256, %s24, [#allocation3], 128, 128, 8
    $region9: #{tpu_custom_call.1} parent=1 // pred_fallthru
      _
    // Predicated region
    $region10: #{tpu_custom_call.1} parent=1 // pred_check
      _
    $region11: #{tpu_custom_call.1} parent=1 // pred_check_branch
      %31 = sbr.rel (0) target = $region13
    $region12: #{tpu_custom_call.1} parent=1 // pred_region
      %32 = dma.done [#allocation5], 16
    $region13: #{tpu_custom_call.1} parent=1 // pred_fallthru
      _
    // Predicated region
    $region14: #{tpu_custom_call.1} parent=1 // pred_check
      _
    $region15: #{tpu_custom_call.1} parent=1 // pred_check_branch
      %34 = sbr.rel (0) target = $region17
    $region16: #{tpu_custom_call.1} parent=1 // pred_region
      %35 = dma.done [#allocation3], 256
    $region17: #{tpu_custom_call.1} parent=1 // pred_fallthru
      _
    %36 = sfence
    %v37 = vld [vmem:[#allocation6] sm:$0xff]
    %s38 = scalar_lea.vmem [#allocation6], 8
    %v39 = vld [vmem:[%s38] sm:$0xff]
    %s40 = sld [smem:[#allocation2]]
    %v41 = vstv %s40
    %v42 = vmul.f32 %v37, %v41
    %s43 = sld [smem:[#allocation2 + $0x3]]
    %v44 = vstv %s43
    %v45 = vmul.f32 %v39, %v44
    %v46 = vadd.f32 %v42, %v45
    %s47 = sld [smem:[#allocation2 + $0x6]]
    %v48 = vstv %s47
    %v49 = vadd.f32 %v46, %v48
    %v50 = vmax.f32 %v49, 0.0
    %s51 = sld [smem:[#allocation2 + $0x1]]
    %v52 = vstv %s51
    %v53 = vmul.f32 %v37, %v52
    %s54 = sld [smem:[#allocation2 + $0x4]]
    %v55 = vstv %s54
    %v56 = vmul.f32 %v39, %v55
    %v57 = vadd.f32 %v53, %v56
    %s58 = sld [smem:[#allocation2 + $0x7]]
    %v59 = vstv %s58
    %v60 = vadd.f32 %v57, %v59
    %v61 = vmax.f32 %v60, 0.0
    %s62 = sld [smem:[#allocation2 + $0x2]]
    %v63 = vstv %s62
    %v64 = vmul.f32 %v37, %v63
    %s65 = sld [smem:[#allocation2 + $0x5]]
    %v66 = vstv %s65
    %v67 = vmul.f32 %v39, %v66
    %v68 = vadd.f32 %v64, %v67
    %s69 = sld [smem:[#allocation2 + $0x8]]
    %v70 = vstv %s69
    %v71 = vadd.f32 %v68, %v70
    %v72 = vmax.f32 %v71, 0.0
    %s73 = sld [smem:[#allocation2 + $0x9]]
    %v74 = vstv %s73
    %v75 = vmul.f32 %v50, %v74
    %s76 = sld [smem:[#allocation2 + $0xc]]
    %v77 = vstv %s76
    %v78 = vmul.f32 %v61, %v77
    %v79 = vadd.f32 %v75, %v78
    %s80 = sld [smem:[#allocation2 + $0xf]]
    %v81 = vstv %s80
    %v82 = vmul.f32 %v72, %v81
    %v83 = vadd.f32 %v79, %v82
    %s84 = sld [smem:[#allocation2 + $0x12]]
    %v85 = vstv %s84
    %v86 = vadd.f32 %v83, %v85
    %v87 = vmax.f32 %v86, 0.0
    %s88 = sld [smem:[#allocation2 + $0xa]]
    %v89 = vstv %s88
    %v90 = vmul.f32 %v50, %v89
    %s91 = sld [smem:[#allocation2 + $0xd]]
    %v92 = vstv %s91
    %v93 = vmul.f32 %v61, %v92
    %v94 = vadd.f32 %v90, %v93
    %s95 = sld [smem:[#allocation2 + $0x10]]
    %v96 = vstv %s95
    %v97 = vmul.f32 %v72, %v96
    %v98 = vadd.f32 %v94, %v97
    %s99 = sld [smem:[#allocation2 + $0x13]]
    %v100 = vstv %s99
    %v101 = vadd.f32 %v98, %v100
    %v102 = vmax.f32 %v101, 0.0
    %s103 = sld [smem:[#allocation2 + $0xb]]
    %v104 = vstv %s103
    %v105 = vmul.f32 %v50, %v104
    %s106 = sld [smem:[#allocation2 + $0xe]]
    %v107 = vstv %s106
    %v108 = vmul.f32 %v61, %v107
    %v109 = vadd.f32 %v105, %v108
    %s110 = sld [smem:[#allocation2 + $0x11]]
    %v111 = vstv %s110
    %v112 = vmul.f32 %v72, %v111
    %v113 = vadd.f32 %v109, %v112
    %s114 = sld [smem:[#allocation2 + $0x14]]
    %v115 = vstv %s114
    %v116 = vadd.f32 %v113, %v115
    %v117 = vmax.f32 %v116, 0.0
    %s118 = sld [smem:[#allocation2 + $0x15]]
    %v119 = vstv %s118
    %v120 = vmul.f32 %v87, %v119
    %s121 = sld [smem:[#allocation2 + $0x16]]
    %v122 = vstv %s121
    %v123 = vmul.f32 %v102, %v122
    %v124 = vadd.f32 %v120, %v123
    %s125 = sld [smem:[#allocation2 + $0x17]]
    %v126 = vstv %s125
    %v127 = vmul.f32 %v117, %v126
    %v128 = vadd.f32 %v124, %v127
    %s129 = sld [smem:[#allocation2 + $0x18]]
    %v130 = vstv %s129
    %v131 = vadd.f32 %v128, %v130
    %132 = vst [vmem:[#allocation7] sm:$0xff] %v131
    // Predicated region
    $region18: #{tpu_custom_call.1} parent=1 // pred_check
      _
    $region19: #{tpu_custom_call.1} parent=1 // pred_check_branch
      %134 = sbr.rel (0) target = $region21
    $region20: #{tpu_custom_call.1} parent=1 // pred_region
      %s136 = ssub.s32 128, 128
      %137 = vsyncadd [#allocation4], %s136
      %s139 = sshll.u32 [#allocation7], 4
      %s140 = int_to_ptr.vmem [resolvable:$true] %s139
      %142 = dma.vmem_to_hbm [thread:$0]  %s140, 128, %s2, [#allocation4]
    $region21: #{tpu_custom_call.1} parent=1 // pred_fallthru
      _
    // Predicated region
    $region22: #{tpu_custom_call.1} parent=1 // pred_check
      _
    $region23: #{tpu_custom_call.1} parent=1 // pred_check_branch
      %144 = sbr.rel (0) target = $region25
    $region24: #{tpu_custom_call.1} parent=1 // pred_region
      %145 = dma.done [#allocation4], 128
    $region25: #{tpu_custom_call.1} parent=1 // pred_fallthru
      _
    %146 = vsyncpa [#allocation3], 1
    %147 = vsyncpa [#allocation4], 1
    %148 = vsyncpa [#allocation5], 1

</llo_original>
